<compile_context>
chip_gen: v7x
topology: tpu7x:2x2x1
jax: 0.10.0
libtpu: 0.0.40
codegen_flags: <defaults>
</compile_context>

<pallas_src>
import functools

import numpy as np
import jax
import jax.numpy as jnp
from jax.experimental import pallas as pl
from jax.experimental.pallas import tpu as pltpu


# ----------------------------------------------------------------------------
# Pallas kernel: one column tile of the reconstruction per grid step.
# ----------------------------------------------------------------------------
def _tikhonov_kernel(x_ref, x0f_ref, x0t_ref, var_ref, a_ref, hft_ref, heff_ref,
                     out_ref, *, inv_n):
    h_dtype = hft_ref.dtype
    # m = y - GF x0 : (B, N) x (N, M) -> (B, M), bf16 MXU with f32 accumulation.
    m = x_ref[...] - jnp.dot(x0f_ref[...].astype(h_dtype), hft_ref[...],
                             preferred_element_type=jnp.float32)
    # Denoise_layer (Wiener): y1 = a / (a + var) * m ; divide on the EUP.
    a = a_ref[...]                                                    # (1, M) = w^2
    y1 = (a * pl.reciprocal(a + var_ref[...], approx=True)) * m       # (B, M)
    # Reconstruction for this column tile: (B, M) x (M, TN) -> (B, TN).
    rec = jnp.dot(y1.astype(h_dtype), heff_ref[...],
                  preferred_element_type=jnp.float32)
    out_ref[...] = x0t_ref[...] + inv_n * rec


# ----------------------------------------------------------------------------
# Init: mirrors TikhonovMeasurementPriorDiag.__init__ and folds the completion
# layer into the reconstruction matrix. Runs once, not per forward call.
# ----------------------------------------------------------------------------
def init_tikhonov_params(sigma, M, H_full, h_dtype=jnp.bfloat16):
    sigma = np.asarray(sigma, dtype=np.float64)
    H = np.asarray(H_full, dtype=np.float64)
    N = sigma.shape[0]
    var_prior = np.diag(sigma)[:M]
    w = np.sqrt(var_prior)                                   # denoi.weight (M,)
    Sigma1 = sigma[:M, :M]
    Sigma21 = sigma[M:, :M]
    W = Sigma21 @ np.linalg.inv(Sigma1)                      # comp.weight (N-M, M)
    # Folded reconstruction matrix: [y1, y1 @ W.T] @ H == y1 @ (H1 + W.T @ H2).
    # (Degenerate N == M gives an empty W and Heff == H[:M, :].)
    heff = H[:M, :] + W.T @ H[M:, :]                         # (M, N)
    return dict(
        a=jnp.asarray((w * w)[None, :], dtype=jnp.float32),  # (1, M)  sigma_prior^2
        hft=jnp.asarray(H[:M, :].T, dtype=h_dtype),          # (N, M)  H_M^T (+/-1: exact in bf16)
        heff=jnp.asarray(heff, dtype=h_dtype),               # (M, N)  folded reconstruction
    )


# ----------------------------------------------------------------------------
# Forward wrapper: batch padding + column-tiled pallas_call.
# ----------------------------------------------------------------------------
def tikhonov_measurement_prior_diag(x, x0, var, params, *, block_n=None):
    x = jnp.asarray(x, jnp.float32)
    x0 = jnp.asarray(x0, jnp.float32)
    var = jnp.asarray(var, jnp.float32)
    a, hft, heff = params["a"], params["hft"], params["heff"]
    B, M = x.shape
    N = x0.shape[-1]
    assert hft.shape == (N, M) and heff.shape == (M, N) and a.shape == (1, M)

    # Lane-dense column tile: multiple of 128 dividing N (<= 512), else whole N.
    if block_n is None:
        block_n = N
        for cand in (512, 384, 256, 128):
            if N % cand == 0:
                block_n = cand
                break
    assert N % block_n == 0, "block_n must divide N"
    n_tiles = N // block_n

    # Pad batch to a multiple of 8 sublanes (avoids masked partial stores).
    B_pad = ((B + 7) // 8) * 8
    if B_pad != B:
        pad = ((0, B_pad - B), (0, 0))
        x, x0, var = (jnp.pad(t, pad) for t in (x, x0, var))

    # VMEM budget: resident operands + double-buffered streamed blocks.
    itm = jnp.dtype(hft.dtype).itemsize
    vmem_bytes = (
        N * M * itm                       # hft (resident, fetched once)
        + 2 * M * block_n * itm           # heff column blocks (double buffered)
        + 4 * (B_pad * N                  # x0 full (resident)
               + 2 * B_pad * M            # x, var (resident)
               + M                        # a
               + 2 * B_pad * block_n      # x0 column tile (double buffered)
               + 2 * B_pad * block_n)     # out tile (double buffered)
    )
    vmem_limit = int(min(100 * 1024 * 1024, max(2 * vmem_bytes, 16 * 1024 * 1024)))

    kernel = functools.partial(_tikhonov_kernel, inv_n=1.0 / float(N))
    out = pl.pallas_call(
        kernel,
        out_shape=jax.ShapeDtypeStruct((B_pad, N), jnp.float32),
        grid=(n_tiles,),
        in_specs=[
            pl.BlockSpec((B_pad, M), lambda j: (0, 0)),        # x        (resident)
            pl.BlockSpec((B_pad, N), lambda j: (0, 0)),        # x0 full  (resident)
            pl.BlockSpec((B_pad, block_n), lambda j: (0, j)),  # x0 column tile
            pl.BlockSpec((B_pad, M), lambda j: (0, 0)),        # var      (resident)
            pl.BlockSpec((1, M), lambda j: (0, 0)),            # a = w^2  (resident)
            pl.BlockSpec((N, M), lambda j: (0, 0)),            # H_M^T    (resident)
            pl.BlockSpec((M, block_n), lambda j: (0, j)),      # Heff column tiles (streamed)
        ],
        out_specs=pl.BlockSpec((B_pad, block_n), lambda j: (0, j)),
        compiler_params=pltpu.CompilerParams(
            dimension_semantics=("parallel",),
            vmem_limit_bytes=vmem_limit,
        ),
    )(x, x0, x0, var, a, hft, heff)
    return out[:B]


# ----------------------------------------------------------------------------
# Helpers: deterministic parameter construction + pure-JAX f32 reference.
# ----------------------------------------------------------------------------
def hadamard_matrix(n):
    H = np.array([[1.0]], dtype=np.float64)
    while H.shape[0] < n:
        H = np.block([[H, H], [H, -H]])
    return H


def reference_forward(x, x0, var, w, W_comp, H_full):
    """Mirrors the PyTorch forward verbatim (f32, concat + full matmuls)."""
    N = x0.shape[-1]
    M = x.shape[-1]
    m = x - x0 @ H_full[:M, :].T
    a = w[None, :] ** 2
    y1 = (a / (a + var)) * m
    y2 = y1 @ W_comp.T
    y = jnp.concatenate([y1, y2], axis=-1)
    return x0 + (1.0 / N) * (y @ H_full)


if __name__ == "__main__":
    B = 4
    h = 16
    N = h * h           # 256 image pixels
    M = 128             # number of measurements

    key = jax.random.PRNGKey(0)
    k_sig, k_x, k_x0, k_var = jax.random.split(key, 4)

    # Deterministic SPD covariance prior Sigma (N, N) — synthetic init.
    A = np.asarray(jax.random.normal(k_sig, (N, N), dtype=jnp.float32), dtype=np.float64)
    sigma = A @ A.T / N + 0.1 * np.eye(N)

    # Measurement operator (HadamSplit, natural ordering): H_full = kron(H_h, H_h).
    # TODO(synk): real spyrit HadamSplit also applies a measurement-ordering
    # permutation / subsampling (Ord); natural ordering is assumed here.
    H1 = hadamard_matrix(h)
    H_full_np = np.kron(H1, H1)                       # (N, N)

    params = init_tikhonov_params(sigma, M, H_full_np, h_dtype=jnp.bfloat16)

    # Forward inputs.
    x = jax.random.normal(k_x, (B, M), dtype=jnp.float32)               # measurements y
    x0 = jax.random.normal(k_x0, (B, N), dtype=jnp.float32)             # prior image
    var = jnp.abs(jax.random.normal(k_var, (B, M), dtype=jnp.float32))  # noise variance

    # block_n=128 -> 2-step grid: exercises the streamed/pipelined Heff path.
    out = tikhonov_measurement_prior_diag(x, x0, var, params, block_n=128)
    out = jax.block_until_ready(out)
    assert out.shape == (B, N)

    # f32 reference matching the PyTorch module. The kernel stores the folded
    # reconstruction matrix in bf16 (the raw +/-1 Hadamard entries are exact; only
    # the W^T-folded part and the activation casts round), so compare at 2e-2.
    w = jnp.asarray(np.sqrt(np.diag(sigma)[:M]), dtype=jnp.float32)
    W_comp = jnp.asarray(sigma[M:, :M] @ np.linalg.inv(sigma[:M, :M]), dtype=jnp.float32)
    ref = reference_forward(x, x0, var, w, W_comp, jnp.asarray(H_full_np, jnp.float32))
    np.testing.assert_allclose(np.asarray(out), np.asarray(ref), rtol=2e-2, atol=2e-2)

    print("KERNEL_OK")
</pallas_src>

<mosaic_0001>
module attributes {stable_mosaic.version = 11 : i64} {
  func.func @_tikhonov_kernel(%arg0: i32, %arg1: memref<8x128xf32, #tpu.memory_space<vmem>>, %arg2: memref<8x256xf32, #tpu.memory_space<vmem>>, %arg3: memref<8x128xf32, #tpu.memory_space<vmem>>, %arg4: memref<8x128xf32, #tpu.memory_space<vmem>>, %arg5: memref<1x128xf32, #tpu.memory_space<vmem>>, %arg6: memref<256x128xbf16, #tpu.memory_space<vmem>>, %arg7: memref<128x128xbf16, #tpu.memory_space<vmem>>, %arg8: memref<8x128xf32, #tpu.memory_space<vmem>>) attributes {dimension_semantics = [#tpu.dimension_semantics<parallel>], iteration_bounds = array<i64: 2>, scalar_prefetch = 0 : i64, scratch_operands = 0 : i64, tpu.core_type = #tpu.core_type<tc>, window_params = [{pipeline_mode = #tpu.pipeline_mode<synchronous>, transform_indices = @transform_0, window_bounds = array<i64: 8, 128>}, {pipeline_mode = #tpu.pipeline_mode<synchronous>, transform_indices = @transform_1, window_bounds = array<i64: 8, 256>}, {transform_indices = @transform_2, window_bounds = array<i64: 8, 128>}, {pipeline_mode = #tpu.pipeline_mode<synchronous>, transform_indices = @transform_3, window_bounds = array<i64: 8, 128>}, {pipeline_mode = #tpu.pipeline_mode<synchronous>, transform_indices = @transform_4, window_bounds = array<i64: 1, 128>}, {pipeline_mode = #tpu.pipeline_mode<synchronous>, transform_indices = @transform_5, window_bounds = array<i64: 256, 128>}, {transform_indices = @transform_6, window_bounds = array<i64: 128, 128>}, {transform_indices = @transform_7, window_bounds = array<i64: 8, 128>}]} {
    %c0 = arith.constant 0 : index
    %c0_0 = arith.constant 0 : index
    %0 = vector.load %arg1[%c0, %c0_0] : memref<8x128xf32, #tpu.memory_space<vmem>>, vector<8x128xf32>
    %c0_1 = arith.constant 0 : index
    %c0_2 = arith.constant 0 : index
    %1 = vector.load %arg2[%c0_1, %c0_2] : memref<8x256xf32, #tpu.memory_space<vmem>>, vector<8x256xf32>
    %2 = arith.truncf %1 : vector<8x256xf32> to vector<8x256xbf16>
    %c0_3 = arith.constant 0 : index
    %c0_4 = arith.constant 0 : index
    %3 = vector.load %arg6[%c0_3, %c0_4] : memref<256x128xbf16, #tpu.memory_space<vmem>>, vector<256x128xbf16>
    %cst = arith.constant dense<0.000000e+00> : vector<8x128xf32>
    %4 = tpu.matmul %2, %3, %cst {dimension_numbers = #tpu.dot_dimension_numbers<[1], [0], [0], [1], [0, 0, 1, 1], [], []>} : vector<8x256xbf16>, vector<256x128xbf16>, vector<8x128xf32> -> vector<8x128xf32>
    %5 = arith.subf %0, %4 : vector<8x128xf32>
    %c0_5 = arith.constant 0 : index
    %c0_6 = arith.constant 0 : index
    %6 = vector.load %arg5[%c0_5, %c0_6] : memref<1x128xf32, #tpu.memory_space<vmem>>, vector<1x128xf32>
    %c0_7 = arith.constant 0 : index
    %c0_8 = arith.constant 0 : index
    %7 = vector.load %arg4[%c0_7, %c0_8] : memref<8x128xf32, #tpu.memory_space<vmem>>, vector<8x128xf32>
    %8 = vector.broadcast %6 : vector<1x128xf32> to vector<8x128xf32>
    %9 = arith.addf %8, %7 : vector<8x128xf32>
    %10 = tpu.reciprocal %9 {approx = true} : vector<8x128xf32> -> vector<8x128xf32>
    %11 = vector.broadcast %6 : vector<1x128xf32> to vector<8x128xf32>
    %12 = arith.mulf %11, %10 : vector<8x128xf32>
    %13 = arith.mulf %12, %5 : vector<8x128xf32>
    %14 = arith.truncf %13 : vector<8x128xf32> to vector<8x128xbf16>
    %c0_9 = arith.constant 0 : index
    %c0_10 = arith.constant 0 : index
    %15 = vector.load %arg7[%c0_9, %c0_10] : memref<128x128xbf16, #tpu.memory_space<vmem>>, vector<128x128xbf16>
    %cst_11 = arith.constant dense<0.000000e+00> : vector<8x128xf32>
    %16 = tpu.matmul %14, %15, %cst_11 {dimension_numbers = #tpu.dot_dimension_numbers<[1], [0], [0], [1], [0, 0, 1, 1], [], []>} : vector<8x128xbf16>, vector<128x128xbf16>, vector<8x128xf32> -> vector<8x128xf32>
    %c0_12 = arith.constant 0 : index
    %c0_13 = arith.constant 0 : index
    %17 = vector.load %arg3[%c0_12, %c0_13] : memref<8x128xf32, #tpu.memory_space<vmem>>, vector<8x128xf32>
    %cst_14 = arith.constant 3.906250e-03 : f32
    %18 = vector.broadcast %cst_14 : f32 to vector<8x128xf32>
    %19 = arith.mulf %18, %16 : vector<8x128xf32>
    %20 = arith.addf %17, %19 : vector<8x128xf32>
    %c0_15 = arith.constant 0 : index
    %c0_16 = arith.constant 0 : index
    %21 = vector.load %arg8[%c0_15, %c0_16] : memref<8x128xf32, #tpu.memory_space<vmem>>, vector<8x128xf32>
    tpu.vector_store %arg8[%c0_15, %c0_16], %20 {strides = array<i32>} : memref<8x128xf32, #tpu.memory_space<vmem>>, vector<8x128xf32>,
    return
  }
  func.func @transform_0(%arg0: i32) -> (i32, i32) {
    %c0_i32 = arith.constant 0 : i32
    %c0_i32_0 = arith.constant 0 : i32
    %c0_i32_1 = arith.constant 0 : i32
    return %c0_i32, %c0_i32_0 : i32, i32
  }
  func.func @transform_1(%arg0: i32) -> (i32, i32) {
    %c0_i32 = arith.constant 0 : i32
    %c0_i32_0 = arith.constant 0 : i32
    %c0_i32_1 = arith.constant 0 : i32
    return %c0_i32, %c0_i32_0 : i32, i32
  }
  func.func @transform_2(%arg0: i32) -> (i32, i32) {
    %c0_i32 = arith.constant 0 : i32
    %c0_i32_0 = arith.constant 0 : i32
    return %c0_i32, %arg0 : i32, i32
  }
  func.func @transform_3(%arg0: i32) -> (i32, i32) {
    %c0_i32 = arith.constant 0 : i32
    %c0_i32_0 = arith.constant 0 : i32
    %c0_i32_1 = arith.constant 0 : i32
    return %c0_i32, %c0_i32_0 : i32, i32
  }
  func.func @transform_4(%arg0: i32) -> (i32, i32) {
    %c0_i32 = arith.constant 0 : i32
    %c0_i32_0 = arith.constant 0 : i32
    %c0_i32_1 = arith.constant 0 : i32
    return %c0_i32, %c0_i32_0 : i32, i32
  }
  func.func @transform_5(%arg0: i32) -> (i32, i32) {
    %c0_i32 = arith.constant 0 : i32
    %c0_i32_0 = arith.constant 0 : i32
    %c0_i32_1 = arith.constant 0 : i32
    return %c0_i32, %c0_i32_0 : i32, i32
  }
  func.func @transform_6(%arg0: i32) -> (i32, i32) {
    %c0_i32 = arith.constant 0 : i32
    %c0_i32_0 = arith.constant 0 : i32
    return %c0_i32, %arg0 : i32, i32
  }
  func.func @transform_7(%arg0: i32) -> (i32, i32) {
    %c0_i32 = arith.constant 0 : i32
    %c0_i32_0 = arith.constant 0 : i32
    return %c0_i32, %arg0 : i32, i32
  }
}

</mosaic_0001>

<llo_original>
// kernel: tpu_custom_call.1
$region0: #{tpu_custom_call.1}
  #allocation0 [shape = 'u32[]', space=smem, size = 0x4, offset = 0x4, fixed_abs, tag = 'smem constant byte address 0x4 - core index']
  #allocation1 [shape = 'u32[144,128]{1,0:T(1,128)}', space=vmem, size = 0x12000, scoped, tag = 'internal scratch']
  %s0 = inlined_call_operand.hbm [shape: f32[8,128], index: 0, kind: input, shape index: {}]
  %s1 = inlined_call_operand.hbm [shape: f32[8,256], index: 1, kind: input, shape index: {}]
  %s2 = inlined_call_operand.hbm [shape: f32[8,256], index: 2, kind: input, shape index: {}]
  %s3 = inlined_call_operand.vmem [shape: f32[8,128], index: 3, kind: input, shape index: {}]
  %s4 = inlined_call_operand.vmem [shape: f32[1,128], index: 4, kind: input, shape index: {}]
  %s5 = inlined_call_operand.hbm [shape: bf16[256,128], index: 5, kind: input, shape index: {}]
  %s6 = inlined_call_operand.hbm [shape: bf16[128,256], index: 6, kind: input, shape index: {}]
  %s7 = inlined_call_operand.hbm [shape: f32[8,256], index: 7, kind: output, shape index: {}]
  %s8 = sld [smem:[#allocation0]]
  $region81: #{tpu_custom_call.1} parent=0
    _
  %s10 = ssub.s32 1, %s8
  %s11 = scalar_select 0, %s10, %s8
  $region1: #{tpu_custom_call.1} parent=0
    #allocation2 [shape = 'u8[4096]{0}', space=vmem, size = 0x1000, scoped, tag = 'input window, operand 0, single buffered']
    #allocation3 [shape = 's32[2]{0}', space=sflag, size = 0x8, scoped, tag = 'scoped memory for tpu_custom_call.1']
    #allocation4 [shape = 's32[2]{0}', space=sflag, size = 0x8, scoped, tag = 'scoped memory for tpu_custom_call.1']
    #allocation5 [shape = 'u8[8192]{0}', space=vmem, size = 0x2000, scoped, tag = 'input window, operand 1, single buffered']
    #allocation6 [shape = 's32[1]{0}', space=sflag, size = 0x4, scoped, tag = 'scoped memory for tpu_custom_call.1']
    #allocation7 [shape = 'u8[8192]{0}', space=vmem, size = 0x2000, scoped, tag = 'input window, operand 2']
    #allocation8 [shape = 'u8[65536]{0}', space=vmem, size = 0x10000, scoped, tag = 'input window, operand 5, single buffered']
    #allocation9 [shape = 'u8[65536]{0}', space=vmem, size = 0x10000, scoped, tag = 'input window, operand 6']
    #allocation10 [shape = 's32[2]{0}', space=sflag, size = 0x8, scoped, tag = 'scoped memory for tpu_custom_call.1']
    #allocation11 [shape = 'u8[8192]{0}', space=vmem, size = 0x2000, scoped, tag = 'output window, operand 0']
    %12 = vsyncpa [#allocation3], 0
    %13 = vsyncpa [#allocation6], 0
    %14 = vsyncpa [#allocation10], 0
    %s15 = scalar_lea.sflag [#allocation10], 1
    %16 = vsyncpa %s15, 0
    %17 = vsyncpa [#allocation4], 0
    %s18 = scalar_lea.sflag [#allocation4], 1
    %19 = vsyncpa %s18, 0
    loop: start=0, step=1, limit=4
    $region2: #{tpu_custom_call.1} parent=1 // loop_pre_header
      _
    $region3: #{tpu_custom_call.1} parent=1 // loop_header
      %s21 = sphi 0, %s25
      %p22 = scmp.ge.s32.totalorder %s21, 4
      %s29 = sphi 0, %s29
      %s31 = sphi 0, %s29
      %s32 = sphi 0, %s31
      %s46 = sphi 0, %s32
      %s50 = sphi 0, %s50
      %s52 = sphi 0, %s50
      %s53 = sphi 0, %s52
      %s67 = sphi 0, %s53
      %s73 = sphi 0, %s75
      %s76 = sphi 0, %s73
      %s77 = sphi 0, %s76
      %s93 = sphi 0, %s77
      %s97 = sphi 0, %s97
      %s99 = sphi 0, %s97
      %s100 = sphi 0, %s99
      %s114 = sphi 0, %s100
      %s118 = sphi 0, %s118
      %s120 = sphi 0, %s118
      %s121 = sphi 0, %s120
      %s135 = sphi 0, %s121
      %s139 = sphi 0, %s139
      %s141 = sphi 0, %s139
      %s142 = sphi 0, %s141
      %s156 = sphi 0, %s142
      %s162 = sphi 0, %s164
      %s165 = sphi 0, %s162
      %s166 = sphi 0, %s165
      %s182 = sphi 0, %s166
      %s188 = sphi 0, %s190
      %s191 = sphi 0, %s188
      %s192 = sphi 0, %s191
      %s208 = sphi 0, %s192
    $region4: #{tpu_custom_call.1} parent=1 // loop_header_branch
      %24 = sbr.rel (%p22) target = $region8
    $region5: #{tpu_custom_call.1} parent=1 // loop_body
      %s26 = ssub.s32 %s21, 1
      %s27 = ssub.s32 %s21, 2
      %s28 = sadd.s32 %s21, 1
      %s30 = sadd.s32 %s29, 1
      %p33 = scmp.eq.s32.totalorder %s21, 1
      %p34 = scmp.ne.s32.totalorder %s29, %s31
      %p35 = scmp.eq.s32.totalorder %s21, 0
      %p36 = por %p34, %p35
      %p37 = scmp.ne.s32.totalorder %s29, %s31
      %p38 = scmp.eq.s32.totalorder %s26, 1
      %p39 = por %p37, %p38
      %p40 = scmp.ne.s32.totalorder %s31, %s32
      %p41 = scmp.eq.s32.totalorder %s26, 0
      %p42 = por %p40, %p41
      %p43 = scmp.ne.s32.totalorder %s31, %s32
      %p44 = scmp.eq.s32.totalorder %s27, 1
      %p45 = por %p43, %p44
      %p47 = scmp.ne.s32.totalorder %s32, %s46
      %p48 = scmp.eq.s32.totalorder %s27, 0
      %p49 = por %p47, %p48
      %s51 = sadd.s32 %s50, 1
      %p54 = scmp.eq.s32.totalorder %s21, 1
      %p55 = scmp.ne.s32.totalorder %s50, %s52
      %p56 = scmp.eq.s32.totalorder %s21, 0
      %p57 = por %p55, %p56
      %p58 = scmp.ne.s32.totalorder %s50, %s52
      %p59 = scmp.eq.s32.totalorder %s26, 1
      %p60 = por %p58, %p59
      %p61 = scmp.ne.s32.totalorder %s52, %s53
      %p62 = scmp.eq.s32.totalorder %s26, 0
      %p63 = por %p61, %p62
      %p64 = scmp.ne.s32.totalorder %s52, %s53
      %p65 = scmp.eq.s32.totalorder %s27, 1
      %p66 = por %p64, %p65
      %p68 = scmp.ne.s32.totalorder %s53, %s67
      %p69 = scmp.eq.s32.totalorder %s27, 0
      %p70 = por %p68, %p69
      %s71 = ssub.s32 %s21, %s28
      %p72 = scmp.eq.s32.totalorder %s71, 0
      %s74 = sadd.s32 %s73, 1
      %s75 = scalar_select %p72, %s73, %s74
      %p78 = pneg %p72
      %p79 = scmp.eq.s32.totalorder %s21, 1
      %p80 = por %p78, %p79
      %p81 = scmp.ne.s32.totalorder %s73, %s76
      %p82 = scmp.eq.s32.totalorder %s21, 0
      %p83 = por %p81, %p82
      %p84 = scmp.ne.s32.totalorder %s73, %s76
      %p85 = scmp.eq.s32.totalorder %s26, 1
      %p86 = por %p84, %p85
      %p87 = scmp.ne.s32.totalorder %s76, %s77
      %p88 = scmp.eq.s32.totalorder %s26, 0
      %p89 = por %p87, %p88
      %p90 = scmp.ne.s32.totalorder %s76, %s77
      %p91 = scmp.eq.s32.totalorder %s27, 1
      %p92 = por %p90, %p91
      %p94 = scmp.ne.s32.totalorder %s77, %s93
      %p95 = scmp.eq.s32.totalorder %s27, 0
      %p96 = por %p94, %p95
      %s98 = sadd.s32 %s97, 1
      %p101 = scmp.eq.s32.totalorder %s21, 1
      %p102 = scmp.ne.s32.totalorder %s97, %s99
      %p103 = scmp.eq.s32.totalorder %s21, 0
      %p104 = por %p102, %p103
      %p105 = scmp.ne.s32.totalorder %s97, %s99
      %p106 = scmp.eq.s32.totalorder %s26, 1
      %p107 = por %p105, %p106
      %p108 = scmp.ne.s32.totalorder %s99, %s100
      %p109 = scmp.eq.s32.totalorder %s26, 0
      %p110 = por %p108, %p109
      %p111 = scmp.ne.s32.totalorder %s99, %s100
      %p112 = scmp.eq.s32.totalorder %s27, 1
      %p113 = por %p111, %p112
      %p115 = scmp.ne.s32.totalorder %s100, %s114
      %p116 = scmp.eq.s32.totalorder %s27, 0
      %p117 = por %p115, %p116
      %s119 = sadd.s32 %s118, 1
      %p122 = scmp.eq.s32.totalorder %s21, 1
      %p123 = scmp.ne.s32.totalorder %s118, %s120
      %p124 = scmp.eq.s32.totalorder %s21, 0
      %p125 = por %p123, %p124
      %p126 = scmp.ne.s32.totalorder %s118, %s120
      %p127 = scmp.eq.s32.totalorder %s26, 1
      %p128 = por %p126, %p127
      %p129 = scmp.ne.s32.totalorder %s120, %s121
      %p130 = scmp.eq.s32.totalorder %s26, 0
      %p131 = por %p129, %p130
      %p132 = scmp.ne.s32.totalorder %s120, %s121
      %p133 = scmp.eq.s32.totalorder %s27, 1
      %p134 = por %p132, %p133
      %p136 = scmp.ne.s32.totalorder %s121, %s135
      %p137 = scmp.eq.s32.totalorder %s27, 0
      %p138 = por %p136, %p137
      %s140 = sadd.s32 %s139, 1
      %p143 = scmp.eq.s32.totalorder %s21, 1
      %p144 = scmp.ne.s32.totalorder %s139, %s141
      %p145 = scmp.eq.s32.totalorder %s21, 0
      %p146 = por %p144, %p145
      %p147 = scmp.ne.s32.totalorder %s139, %s141
      %p148 = scmp.eq.s32.totalorder %s26, 1
      %p149 = por %p147, %p148
      %p150 = scmp.ne.s32.totalorder %s141, %s142
      %p151 = scmp.eq.s32.totalorder %s26, 0
      %p152 = por %p150, %p151
      %p153 = scmp.ne.s32.totalorder %s141, %s142
      %p154 = scmp.eq.s32.totalorder %s27, 1
      %p155 = por %p153, %p154
      %p157 = scmp.ne.s32.totalorder %s142, %s156
      %p158 = scmp.eq.s32.totalorder %s27, 0
      %p159 = por %p157, %p158
      %s160 = ssub.s32 %s21, %s28
      %p161 = scmp.eq.s32.totalorder %s160, 0
      %s163 = sadd.s32 %s162, 1
      %s164 = scalar_select %p161, %s162, %s163
      %p167 = pneg %p161
      %p168 = scmp.eq.s32.totalorder %s21, 1
      %p169 = por %p167, %p168
      %p170 = scmp.ne.s32.totalorder %s162, %s165
      %p171 = scmp.eq.s32.totalorder %s21, 0
      %p172 = por %p170, %p171
      %p173 = scmp.ne.s32.totalorder %s162, %s165
      %p174 = scmp.eq.s32.totalorder %s26, 1
      %p175 = por %p173, %p174
      %p176 = scmp.ne.s32.totalorder %s165, %s166
      %p177 = scmp.eq.s32.totalorder %s26, 0
      %p178 = por %p176, %p177
      %p179 = scmp.ne.s32.totalorder %s165, %s166
      %p180 = scmp.eq.s32.totalorder %s27, 1
      %p181 = por %p179, %p180
      %p183 = scmp.ne.s32.totalorder %s166, %s182
      %p184 = scmp.eq.s32.totalorder %s27, 0
      %p185 = por %p183, %p184
      %s186 = ssub.s32 %s21, %s28
      %p187 = scmp.eq.s32.totalorder %s186, 0
      %s189 = sadd.s32 %s188, 1
      %s190 = scalar_select %p187, %s188, %s189
      %p193 = pneg %p187
      %p194 = scmp.eq.s32.totalorder %s21, 1
      %p195 = por %p193, %p194
      %p196 = scmp.ne.s32.totalorder %s188, %s191
      %p197 = scmp.eq.s32.totalorder %s21, 0
      %p198 = por %p196, %p197
      %p199 = scmp.ne.s32.totalorder %s188, %s191
      %p200 = scmp.eq.s32.totalorder %s26, 1
      %p201 = por %p199, %p200
      %p202 = scmp.ne.s32.totalorder %s191, %s192
      %p203 = scmp.eq.s32.totalorder %s26, 0
      %p204 = por %p202, %p203
      %p205 = scmp.ne.s32.totalorder %s191, %s192
      %p206 = scmp.eq.s32.totalorder %s27, 1
      %p207 = por %p205, %p206
      %p209 = scmp.ne.s32.totalorder %s192, %s208
      %p210 = scmp.eq.s32.totalorder %s27, 0
      %p211 = por %p209, %p210
      %p212 = scmp.le.s32.totalorder 1, %s21
      %p213 = scmp.lt.s32.totalorder %s21, 3
      %p214 = pnand %p212, %p213
      %p215 = pneg %p214
      // Predicated region
      $region9: #{tpu_custom_call.1} parent=5 // pred_check
        _
      $region10: #{tpu_custom_call.1} parent=5 // pred_check_branch
        %217 = sbr.rel (%p214) target = $region12
      $region11: #{tpu_custom_call.1} parent=5 // pred_region
        %s218 = ssub.s32 %s21, 1
        // Predicated region
        $region13: #{tpu_custom_call.1} parent=11 // pred_check
          %p219 = pneg %p42
        $region14: #{tpu_custom_call.1} parent=11 // pred_check_branch
          %221 = sbr.rel (%p219) target = $region16
        $region15: #{tpu_custom_call.1} parent=11 // pred_region
          %s223 = ssub.s32 128, 128
          %224 = vsyncadd [#allocation3], %s223
          %s226 = sshll.u32 [#allocation2], 4
          %s227 = int_to_ptr.vmem [resolvable:$true] %s226
          %229 = dma.hbm_to_vmem [thread:$0]  %s0, 128, %s227, [#allocation3]
        $region16: #{tpu_custom_call.1} parent=11 // pred_fallthru
          _
        // Predicated region
        $region17: #{tpu_custom_call.1} parent=11 // pred_check
          %p230 = pneg %p63
        $region18: #{tpu_custom_call.1} parent=11 // pred_check_branch
          %232 = sbr.rel (%p230) target = $region20
        $region19: #{tpu_custom_call.1} parent=11 // pred_region
          %s234 = ssub.s32 256, 256
          %235 = vsyncadd [#allocation6], %s234
          %s237 = sshll.u32 [#allocation5], 4
          %s238 = int_to_ptr.vmem [resolvable:$true] %s237
          %240 = dma.hbm_to_vmem [thread:$0]  %s1, 256, %s238, [#allocation6]
        $region20: #{tpu_custom_call.1} parent=11 // pred_fallthru
          _
        // Predicated region
        $region21: #{tpu_custom_call.1} parent=11 // pred_check
          %p241 = pneg %p110
        $region22: #{tpu_custom_call.1} parent=11 // pred_check_branch
          %243 = sbr.rel (%p241) target = $region24
        $region23: #{tpu_custom_call.1} parent=11 // pred_region
          _
        $region24: #{tpu_custom_call.1} parent=11 // pred_fallthru
          _
        // Predicated region
        $region25: #{tpu_custom_call.1} parent=11 // pred_check
          %p244 = pneg %p131
        $region26: #{tpu_custom_call.1} parent=11 // pred_check_branch
          %246 = sbr.rel (%p244) target = $region28
        $region27: #{tpu_custom_call.1} parent=11 // pred_region
          _
        $region28: #{tpu_custom_call.1} parent=11 // pred_fallthru
          _
        // Predicated region
        $region29: #{tpu_custom_call.1} parent=11 // pred_check
          %p247 = pneg %p152
        $region30: #{tpu_custom_call.1} parent=11 // pred_check_branch
          %249 = sbr.rel (%p247) target = $region32
        $region31: #{tpu_custom_call.1} parent=11 // pred_region
          %s251 = ssub.s32 2048, 2048
          %252 = vsyncadd [#allocation6], %s251
          %s253 = sshll.u32 [#allocation8], 4
          %s254 = int_to_ptr.vmem [resolvable:$true] %s253
          %259 = dma.hbm_to_vmem [thread:$0]  %s5, 2048, %s254, [#allocation6], 64, 64, 4
        $region32: #{tpu_custom_call.1} parent=11 // pred_fallthru
          _
      $region12: #{tpu_custom_call.1} parent=5 // pred_fallthru
        _
      %p260 = scmp.lt.s32.totalorder %s21, 2
      // Predicated region
      $region33: #{tpu_custom_call.1} parent=5 // pred_check
        %p261 = pneg %p260
      $region34: #{tpu_custom_call.1} parent=5 // pred_check_branch
        %263 = sbr.rel (%p261) target = $region36
      $region35: #{tpu_custom_call.1} parent=5 // pred_region
        // Predicated region
        $region37: #{tpu_custom_call.1} parent=35 // pred_check
          %p264 = pneg %p83
        $region38: #{tpu_custom_call.1} parent=35 // pred_check_branch
          %266 = sbr.rel (%p264) target = $region40
        $region39: #{tpu_custom_call.1} parent=35 // pred_region
          %s267 = sand.u32 %s21, 1
          %s268 = scalar_lea.sflag [#allocation3], %s267
          %s269 = sand.u32 %s73, 1
          %s270 = smul.addr %s269, 8
          %s271 = scalar_lea.vmem [#allocation7], %s270
          %s273 = ssub.s32 128, 128
          %274 = vsyncadd %s268, %s273
          %s275 = smul.addr %s21, 128
          %s276 = scalar_lea.hbm %s2, %s275
          %s278 = sshll.u32 %s271, 4
          %s279 = int_to_ptr.vmem [resolvable:$true] %s278
          %281 = dma.hbm_to_vmem [thread:$0]  %s276, 128, %s279, %s268
        $region40: #{tpu_custom_call.1} parent=35 // pred_fallthru
          _
        // Predicated region
        $region41: #{tpu_custom_call.1} parent=35 // pred_check
          %p282 = pneg %p172
        $region42: #{tpu_custom_call.1} parent=35 // pred_check_branch
          %284 = sbr.rel (%p282) target = $region44
        $region43: #{tpu_custom_call.1} parent=35 // pred_region
          %s285 = sand.u32 %s162, 1
          %s286 = scalar_lea.sflag [#allocation10], %s285
          %s287 = sand.u32 %s162, 1
          %s288 = smul.addr %s287, 64
          %s289 = scalar_lea.vmem [#allocation9], %s288
          %s291 = ssub.s32 1024, 1024
          %292 = vsyncadd %s286, %s291
          %s293 = smul.addr %s21, 64
          %s294 = scalar_lea.hbm %s6, %s293
          %s295 = sshll.u32 %s289, 4
          %s296 = int_to_ptr.vmem [resolvable:$true] %s295
          %301 = dma.hbm_to_vmem [thread:$0]  %s294, 1024, %s296, %s286, 128, 64, 4
        $region44: #{tpu_custom_call.1} parent=35 // pred_fallthru
          _
      $region36: #{tpu_custom_call.1} parent=5 // pred_fallthru
        _
      %p302 = scmp.le.s32.totalorder 1, %s21
      %p303 = scmp.lt.s32.totalorder %s21, 3
      %p304 = pnand %p302, %p303
      %p305 = pneg %p304
      // Predicated region
      $region45: #{tpu_custom_call.1} parent=5 // pred_check
        _
      $region46: #{tpu_custom_call.1} parent=5 // pred_check_branch
        %307 = sbr.rel (%p304) target = $region48
      $region47: #{tpu_custom_call.1} parent=5 // pred_region
        %s308 = ssub.s32 %s21, 1
        // Predicated region
        $region49: #{tpu_custom_call.1} parent=47 // pred_check
          %p309 = pneg %p42
        $region50: #{tpu_custom_call.1} parent=47 // pred_check_branch
          %311 = sbr.rel (%p309) target = $region52
        $region51: #{tpu_custom_call.1} parent=47 // pred_region
          %312 = dma.done [#allocation3], 128
        $region52: #{tpu_custom_call.1} parent=47 // pred_fallthru
          _
        // Predicated region
        $region53: #{tpu_custom_call.1} parent=47 // pred_check
          %p313 = pneg %p63
        $region54: #{tpu_custom_call.1} parent=47 // pred_check_branch
          %315 = sbr.rel (%p313) target = $region56
        $region55: #{tpu_custom_call.1} parent=47 // pred_region
          %316 = dma.done [#allocation6], 256
        $region56: #{tpu_custom_call.1} parent=47 // pred_fallthru
          _
        %s317 = sand.u32 %s26, 1
        %s318 = scalar_lea.sflag [#allocation3], %s317
        %s319 = sand.u32 %s76, 1
        %s320 = smul.addr %s319, 8
        %s321 = scalar_lea.vmem [#allocation7], %s320
        // Predicated region
        $region57: #{tpu_custom_call.1} parent=47 // pred_check
          %p322 = pneg %p89
        $region58: #{tpu_custom_call.1} parent=47 // pred_check_branch
          %324 = sbr.rel (%p322) target = $region60
        $region59: #{tpu_custom_call.1} parent=47 // pred_region
          %325 = dma.done %s318, 128
        $region60: #{tpu_custom_call.1} parent=47 // pred_fallthru
          _
        // Predicated region
        $region61: #{tpu_custom_call.1} parent=47 // pred_check
          %p326 = pneg %p152
        $region62: #{tpu_custom_call.1} parent=47 // pred_check_branch
          %328 = sbr.rel (%p326) target = $region64
        $region63: #{tpu_custom_call.1} parent=47 // pred_region
          %329 = dma.done [#allocation6], 2048
        $region64: #{tpu_custom_call.1} parent=47 // pred_fallthru
          _
        %s330 = sand.u32 %s165, 1
        %s331 = scalar_lea.sflag [#allocation10], %s330
        %s332 = sand.u32 %s165, 1
        %s333 = smul.addr %s332, 64
        %s334 = scalar_lea.vmem [#allocation9], %s333
        // Predicated region
        $region65: #{tpu_custom_call.1} parent=47 // pred_check
          %p335 = pneg %p178
        $region66: #{tpu_custom_call.1} parent=47 // pred_check_branch
          %337 = sbr.rel (%p335) target = $region68
        $region67: #{tpu_custom_call.1} parent=47 // pred_region
          %338 = dma.done %s331, 1024
        $region68: #{tpu_custom_call.1} parent=47 // pred_fallthru
          _
        %p339 = pneg %p42
        %p340 = pneg %p39
        %p341 = pneg %p63
        %p342 = pneg %p60
        %s343 = sand.u32 %s26, 1
        %s344 = scalar_lea.sflag [#allocation3], %s343
        %s345 = sand.u32 %s76, 1
        %s346 = smul.addr %s345, 8
        %s347 = scalar_lea.vmem [#allocation7], %s346
        %p348 = pneg %p89
        %p349 = pneg %p86
        %p350 = pneg %p110
        %p351 = pneg %p107
        %p352 = pneg %p131
        %p353 = pneg %p128
        %p354 = pneg %p152
        %p355 = pneg %p149
        %s356 = sand.u32 %s165, 1
        %s357 = scalar_lea.sflag [#allocation10], %s356
        %s358 = sand.u32 %s165, 1
        %s359 = smul.addr %s358, 64
        %s360 = scalar_lea.vmem [#allocation9], %s359
        %p361 = pneg %p178
        %p362 = pneg %p175
        %p363 = pneg %p204
        %p364 = pneg %p201
        %s365 = sand.u32 %s191, 1
        %s366 = scalar_lea.sflag [#allocation4], %s365
        %s367 = sand.u32 %s191, 1
        %s368 = smul.addr %s367, 8
        %s369 = scalar_lea.vmem [#allocation11], %s368
        %v371 = vld [vmem:[#allocation2] sm:$0xff]
        %v372 = vld [vmem:[#allocation5] sm:$0xff]
        %v373 = vld [vmem:[#allocation5 + $0x8] sm:$0xff]
        %v374 = vpack.c.bf16 %v372, %v372
        %v375 = vpack.c.bf16 %v373, %v373
        %v376 = vld [vmem:[#allocation8] sm:$0xf]
        %v377 = vld [vmem:[#allocation8 + $0x4] sm:$0xf]
        %v378 = vld [vmem:[#allocation8 + $0x8] sm:$0xf]
        %v379 = vld [vmem:[#allocation8 + $0xc] sm:$0xf]
        %v380 = vld [vmem:[#allocation8 + $0x10] sm:$0xf]
        %v381 = vld [vmem:[#allocation8 + $0x14] sm:$0xf]
        %v382 = vld [vmem:[#allocation8 + $0x18] sm:$0xf]
        %v383 = vld [vmem:[#allocation8 + $0x1c] sm:$0xf]
        %v384 = vld [vmem:[#allocation8 + $0x20] sm:$0xf]
        %v385 = vld [vmem:[#allocation8 + $0x24] sm:$0xf]
        %v386 = vld [vmem:[#allocation8 + $0x28] sm:$0xf]
        %v387 = vld [vmem:[#allocation8 + $0x2c] sm:$0xf]
        %v388 = vld [vmem:[#allocation8 + $0x30] sm:$0xf]
        %v389 = vld [vmem:[#allocation8 + $0x34] sm:$0xf]
        %v390 = vld [vmem:[#allocation8 + $0x38] sm:$0xf]
        %v391 = vld [vmem:[#allocation8 + $0x3c] sm:$0xf]
        %v392 = vld [vmem:[#allocation8 + $0x40] sm:$0xf]
        %v393 = vld [vmem:[#allocation8 + $0x44] sm:$0xf]
        %v394 = vld [vmem:[#allocation8 + $0x48] sm:$0xf]
        %v395 = vld [vmem:[#allocation8 + $0x4c] sm:$0xf]
        %v396 = vld [vmem:[#allocation8 + $0x50] sm:$0xf]
        %v397 = vld [vmem:[#allocation8 + $0x54] sm:$0xf]
        %v398 = vld [vmem:[#allocation8 + $0x58] sm:$0xf]
        %v399 = vld [vmem:[#allocation8 + $0x5c] sm:$0xf]
        %v400 = vld [vmem:[#allocation8 + $0x60] sm:$0xf]
        %v401 = vld [vmem:[#allocation8 + $0x64] sm:$0xf]
        %v402 = vld [vmem:[#allocation8 + $0x68] sm:$0xf]
        %v403 = vld [vmem:[#allocation8 + $0x6c] sm:$0xf]
        %v404 = vld [vmem:[#allocation8 + $0x70] sm:$0xf]
        %v405 = vld [vmem:[#allocation8 + $0x74] sm:$0xf]
        %v406 = vld [vmem:[#allocation8 + $0x78] sm:$0xf]
        %v407 = vld [vmem:[#allocation8 + $0x7c] sm:$0xf]
        %v440 = vunpack.c.l.b16 %v376
        %v441 = vunpack.c.l.b16 %v377
        %v442 = vunpack.c.l.b16 %v378
        %v443 = vunpack.c.l.b16 %v379
        %v444 = vunpack.c.l.b16 %v380
        %v445 = vunpack.c.l.b16 %v381
        %v446 = vunpack.c.l.b16 %v382
        %v447 = vunpack.c.l.b16 %v383
        %v448 = vunpack.c.l.b16 %v384
        %v449 = vunpack.c.l.b16 %v385
        %v450 = vunpack.c.l.b16 %v386
        %v451 = vunpack.c.l.b16 %v387
        %v452 = vunpack.c.l.b16 %v388
        %v453 = vunpack.c.l.b16 %v389
        %v454 = vunpack.c.l.b16 %v390
        %v455 = vunpack.c.l.b16 %v391
        %v456 = vunpack.c.l.b16 %v392
        %v457 = vunpack.c.l.b16 %v393
        %v458 = vunpack.c.l.b16 %v394
        %v459 = vunpack.c.l.b16 %v395
        %v460 = vunpack.c.l.b16 %v396
        %v461 = vunpack.c.l.b16 %v397
        %v462 = vunpack.c.l.b16 %v398
        %v463 = vunpack.c.l.b16 %v399
        %v464 = vunpack.c.l.b16 %v400
        %v465 = vunpack.c.l.b16 %v401
        %v466 = vunpack.c.l.b16 %v402
        %v467 = vunpack.c.l.b16 %v403
        %v468 = vunpack.c.l.b16 %v404
        %v469 = vunpack.c.l.b16 %v405
        %v470 = vunpack.c.l.b16 %v406
        %v471 = vunpack.c.l.b16 %v407
        %v472 = vpack.c.b16 %v441, %v440
        %v473 = vpack.c.b16 %v443, %v442
        %v474 = vpack.c.b16 %v445, %v444
        %v475 = vpack.c.b16 %v447, %v446
        %v476 = vpack.c.b16 %v449, %v448
        %v477 = vpack.c.b16 %v451, %v450
        %v478 = vpack.c.b16 %v453, %v452
        %v479 = vpack.c.b16 %v455, %v454
        %v480 = vpack.c.b16 %v457, %v456
        %v481 = vpack.c.b16 %v459, %v458
        %v482 = vpack.c.b16 %v461, %v460
        %v483 = vpack.c.b16 %v463, %v462
        %v484 = vpack.c.b16 %v465, %v464
        %v485 = vpack.c.b16 %v467, %v466
        %v486 = vpack.c.b16 %v469, %v468
        %v487 = vpack.c.b16 %v471, %v470
        %504 = vmatprep.subr.bf16.mxu0 0
        %505 = vmatpush1.bf16.msra.mxu0 %v472
        %506 = vmatprep.subr.bf16.mxu0 0
        %507 = vmatpush1.bf16.msra.mxu0 %v473
        %508 = vmatprep.subr.bf16.mxu0 0
        %509 = vmatpush1.bf16.msra.mxu0 %v474
        %510 = vmatprep.subr.bf16.mxu0 0
        %511 = vmatpush1.bf16.msra.mxu0 %v475
        %512 = vmatprep.subr.bf16.mxu0 0
        %513 = vmatpush1.bf16.msra.mxu0 %v476
        %514 = vmatprep.subr.bf16.mxu0 0
        %515 = vmatpush1.bf16.msra.mxu0 %v477
        %516 = vmatprep.subr.bf16.mxu0 0
        %517 = vmatpush1.bf16.msra.mxu0 %v478
        %518 = vmatprep.subr.bf16.mxu0 0
        %519 = vmatpush1.bf16.msra.mxu0 %v479
        %520 = vmatprep.subr.bf16.mxu0 0
        %521 = vmatpush1.bf16.msra.mxu0 %v480
        %522 = vmatprep.subr.bf16.mxu0 0
        %523 = vmatpush1.bf16.msra.mxu0 %v481
        %524 = vmatprep.subr.bf16.mxu0 0
        %525 = vmatpush1.bf16.msra.mxu0 %v482
        %526 = vmatprep.subr.bf16.mxu0 0
        %527 = vmatpush1.bf16.msra.mxu0 %v483
        %528 = vmatprep.subr.bf16.mxu0 0
        %529 = vmatpush1.bf16.msra.mxu0 %v484
        %530 = vmatprep.subr.bf16.mxu0 0
        %531 = vmatpush1.bf16.msra.mxu0 %v485
        %532 = vmatprep.subr.bf16.mxu0 0
        %533 = vmatpush1.bf16.msra.mxu0 %v486
        %534 = vmatprep.subr.bf16.mxu0 0
        %535 = vmatpush1.bf16.msra.mxu0 %v487
        %536 = vmatprep.mubr.bf16.mxu0 %v375
        %537 = vmatmul.mubr.bf16.gmra.mrb[0].mxu0 %v374
        %v538 = vpop.f32.mrb[0].mxu0
        %v539 = vadd.f32 0.0, %v538
        %v540 = vpop.f32.mrb[0].mxu0
        %v541 = vpop.f32.mrb[0].mxu0
        %v542 = vpop.f32.mrb[0].mxu0
        %543 = vdwg.mxu0
        %v544 = vsub.f32 %v371, %v539
        %v545 = vld [vmem:[%s4] sm:$0x1]
        %v546 = vld [vmem:[%s3] sm:$0xff]
        %v548 = vlaneseq
        %v549 = vshrl.u32 %v548, 7
        %v550 = vsub.s32 0, %v549
        %v551 = vrot.slane %v545, %v550
        %v553 = vadd.f32 %v551, %v546
        %v554 = vrcp.pop %v553
        %v555 = vmul.f32 %v551, %v554
        %v556 = vmul.f32 %v555, %v544
        %v557 = vpack.c.bf16 %v556, %v556
        %v558 = vld [vmem:[%s334] sm:$0xf]
        %v559 = vld [vmem:[%s334 + $0x4] sm:$0xf]
        %v560 = vld [vmem:[%s334 + $0x8] sm:$0xf]
        %v561 = vld [vmem:[%s334 + $0xc] sm:$0xf]
        %v562 = vld [vmem:[%s334 + $0x10] sm:$0xf]
        %v563 = vld [vmem:[%s334 + $0x14] sm:$0xf]
        %v564 = vld [vmem:[%s334 + $0x18] sm:$0xf]
        %v565 = vld [vmem:[%s334 + $0x1c] sm:$0xf]
        %v566 = vld [vmem:[%s334 + $0x20] sm:$0xf]
        %v567 = vld [vmem:[%s334 + $0x24] sm:$0xf]
        %v568 = vld [vmem:[%s334 + $0x28] sm:$0xf]
        %v569 = vld [vmem:[%s334 + $0x2c] sm:$0xf]
        %v570 = vld [vmem:[%s334 + $0x30] sm:$0xf]
        %v571 = vld [vmem:[%s334 + $0x34] sm:$0xf]
        %v572 = vld [vmem:[%s334 + $0x38] sm:$0xf]
        %v573 = vld [vmem:[%s334 + $0x3c] sm:$0xf]
        %v590 = vunpack.c.l.b16 %v558
        %v591 = vunpack.c.l.b16 %v559
        %v592 = vunpack.c.l.b16 %v560
        %v593 = vunpack.c.l.b16 %v561
        %v594 = vunpack.c.l.b16 %v562
        %v595 = vunpack.c.l.b16 %v563
        %v596 = vunpack.c.l.b16 %v564
        %v597 = vunpack.c.l.b16 %v565
        %v598 = vunpack.c.l.b16 %v566
        %v599 = vunpack.c.l.b16 %v567
        %v600 = vunpack.c.l.b16 %v568
        %v601 = vunpack.c.l.b16 %v569
        %v602 = vunpack.c.l.b16 %v570
        %v603 = vunpack.c.l.b16 %v571
        %v604 = vunpack.c.l.b16 %v572
        %v605 = vunpack.c.l.b16 %v573
        %v606 = vpack.c.b16 %v591, %v590
        %v607 = vpack.c.b16 %v593, %v592
        %v608 = vpack.c.b16 %v595, %v594
        %v609 = vpack.c.b16 %v597, %v596
        %v610 = vpack.c.b16 %v599, %v598
        %v611 = vpack.c.b16 %v601, %v600
        %v612 = vpack.c.b16 %v603, %v602
        %v613 = vpack.c.b16 %v605, %v604
        %622 = vmatprep.subr.bf16.mxu0 0
        %623 = vmatpush1.bf16.msra.mxu0 %v606
        %624 = vmatprep.subr.bf16.mxu0 0
        %625 = vmatpush1.bf16.msra.mxu0 %v607
        %626 = vmatprep.subr.bf16.mxu0 0
        %627 = vmatpush1.bf16.msra.mxu0 %v608
        %628 = vmatprep.subr.bf16.mxu0 0
        %629 = vmatpush1.bf16.msra.mxu0 %v609
        %630 = vmatprep.subr.bf16.mxu0 0
        %631 = vmatpush1.bf16.msra.mxu0 %v610
        %632 = vmatprep.subr.bf16.mxu0 0
        %633 = vmatpush1.bf16.msra.mxu0 %v611
        %634 = vmatprep.subr.bf16.mxu0 0
        %635 = vmatpush1.bf16.msra.mxu0 %v612
        %636 = vmatprep.subr.bf16.mxu0 0
        %637 = vmatpush1.bf16.msra.mxu0 %v613
        %638 = vmatprep.subr.bf16.mxu0 0
        %639 = vmatpush1.bf16.msra.mxu0 0
        %640 = vmatprep.subr.bf16.mxu0 0
        %641 = vmatpush1.bf16.msra.mxu0 0
        %642 = vmatprep.subr.bf16.mxu0 0
        %643 = vmatpush1.bf16.msra.mxu0 0
        %644 = vmatprep.subr.bf16.mxu0 0
        %645 = vmatpush1.bf16.msra.mxu0 0
        %646 = vmatprep.subr.bf16.mxu0 0
        %647 = vmatpush1.bf16.msra.mxu0 0
        %648 = vmatprep.subr.bf16.mxu0 0
        %649 = vmatpush1.bf16.msra.mxu0 0
        %650 = vmatprep.subr.bf16.mxu0 0
        %651 = vmatpush1.bf16.msra.mxu0 0
        %652 = vmatprep.subr.bf16.mxu0 0
        %653 = vmatpush1.bf16.msra.mxu0 0
        %654 = vmatprep.mubr.bf16.mxu0 0
        %655 = vmatmul.mubr.bf16.gmra.mrb[0].mxu0 %v557
        %v656 = vpop.f32.mrb[0].mxu0
        %v657 = vadd.f32 0.0, %v656
        %v658 = vpop.f32.mrb[0].mxu0
        %v659 = vpop.f32.mrb[0].mxu0
        %v660 = vpop.f32.mrb[0].mxu0
        %661 = vdwg.mxu0
        %v662 = vld [vmem:[%s321] sm:$0xff]
        %v663 = vmul.f32 %v657, 0.00390625
        %v664 = vadd.f32 %v662, %v663
        %665 = vst [vmem:[%s369] sm:$0xff] %v664
        %s666 = sand.u32 %s191, 1
        %s667 = scalar_lea.sflag [#allocation4], %s666
        %s668 = sand.u32 %s191, 1
        %s669 = smul.addr %s668, 8
        %s670 = scalar_lea.vmem [#allocation11], %s669
        // Predicated region
        $region69: #{tpu_custom_call.1} parent=47 // pred_check
          %p671 = pneg %p201
        $region70: #{tpu_custom_call.1} parent=47 // pred_check_branch
          %673 = sbr.rel (%p671) target = $region72
        $region71: #{tpu_custom_call.1} parent=47 // pred_region
          %s675 = ssub.s32 128, 128
          %676 = vsyncadd %s667, %s675
          %s677 = smul.addr %s26, 128
          %s678 = scalar_lea.hbm %s7, %s677
          %s680 = sshll.u32 %s670, 4
          %s681 = int_to_ptr.vmem [resolvable:$true] %s680
          %683 = dma.vmem_to_hbm [thread:$0]  %s681, 128, %s678, %s667
        $region72: #{tpu_custom_call.1} parent=47 // pred_fallthru
          _
      $region48: #{tpu_custom_call.1} parent=5 // pred_fallthru
        _
      %p684 = scmp.le.s32.totalorder 2, %s21
      // Predicated region
      $region73: #{tpu_custom_call.1} parent=5 // pred_check
        %p685 = pneg %p684
      $region74: #{tpu_custom_call.1} parent=5 // pred_check_branch
        %687 = sbr.rel (%p685) target = $region76
      $region75: #{tpu_custom_call.1} parent=5 // pred_region
        %s688 = ssub.s32 %s21, 2
        // Predicated region
        $region77: #{tpu_custom_call.1} parent=75 // pred_check
          %p689 = pneg %p207
        $region78: #{tpu_custom_call.1} parent=75 // pred_check_branch
          %691 = sbr.rel (%p689) target = $region80
        $region79: #{tpu_custom_call.1} parent=75 // pred_region
          %s692 = sand.u32 %s192, 1
          %s693 = scalar_lea.sflag [#allocation4], %s692
          %s694 = sand.u32 %s192, 1
          %s695 = smul.addr %s694, 8
          %s696 = scalar_lea.vmem [#allocation11], %s695
          %697 = dma.done %s693, 128
        $region80: #{tpu_custom_call.1} parent=75 // pred_fallthru
          _
      $region76: #{tpu_custom_call.1} parent=5 // pred_fallthru
        _
    $region6: #{tpu_custom_call.1} parent=1 // loop_footer
      %s25 = sadd.s32 1, %s21
    $region7: #{tpu_custom_call.1} parent=1 // loop_footer_branch
      %20 = sbr.rel target = $region3
    $region8: #{tpu_custom_call.1} parent=1 // loop_exit
      _
    %698 = vsyncpa [#allocation3], 1
    %s699 = scalar_lea.sflag [#allocation3], 1
    %700 = vsyncpa %s699, 1
    %701 = vsyncpa [#allocation6], 1
    %702 = vsyncpa [#allocation10], 1
    %s703 = scalar_lea.sflag [#allocation10], 1
    %704 = vsyncpa %s703, 1
    %705 = vsyncpa [#allocation4], 1
    %s706 = scalar_lea.sflag [#allocation4], 1
    %707 = vsyncpa %s706, 1

</llo_original>
